<compile_context>
chip_gen: v7x
topology: tpu7x:2x2x1
jax: 0.10.0
libtpu: 0.0.40
codegen_flags: <defaults>
</compile_context>

<pallas_src>
import jax
import jax.numpy as jnp
from jax.experimental import pallas as pl
from jax.experimental.pallas import tpu as pltpu

_LN_EPS = 1e-5  # torch.nn.LayerNorm default


def _decoder_embeddings_kernel(ids_ref,          # (B*S,) int32 in SMEM (scalar prefetch)
                               word_hbm,         # (V, H) in HBM (pl.ANY)
                               pos_ref,          # (tile_s, H) VMEM block
                               gamma_ref,        # (1, H) VMEM (resident)
                               beta_ref,         # (1, H) VMEM (resident)
                               out_ref,          # (1, tile_s, H) VMEM block
                               wbuf,             # (tile_s, H) VMEM scratch
                               sem):             # scalar DMA semaphore
    b = pl.program_id(0)
    st = pl.program_id(1)
    tile_s = wbuf.shape[0]
    seq_len = pl.num_programs(1) * tile_s
    base = b * seq_len + st * tile_s

    # Gather tile_s word-embedding rows from HBM into VMEM: one small row DMA
    # per token, indexed by the scalar-prefetched ids in SMEM.
    @pl.loop(0, tile_s)
    def _issue(i):
        tid = ids_ref[base + i]
        pltpu.make_async_copy(word_hbm.at[pl.ds(tid, 1)],
                              wbuf.at[pl.ds(i, 1)],
                              sem).start()

    @pl.loop(0, tile_s)
    def _drain(i):
        pltpu.make_async_copy(word_hbm.at[pl.ds(0, 1)],
                              wbuf.at[pl.ds(i, 1)],
                              sem).wait()

    x = wbuf[...].astype(jnp.float32) + pos_ref[...].astype(jnp.float32)

    # Fused LayerNorm (reduction over the hidden/lane axis) + affine.
    mean = jnp.mean(x, axis=-1, keepdims=True)
    var = jnp.mean((x - mean) ** 2, axis=-1, keepdims=True)
    normed = (x - mean) * jax.lax.rsqrt(var + _LN_EPS)
    out = normed * gamma_ref[...] + beta_ref[...]

    # TODO(synk): nn.Dropout is identity in eval mode; training-mode dropout
    # would use pltpu.prng_seed / pltpu.stateful_bernoulli here.
    out_ref[0] = out.astype(out_ref.dtype)


def _pick_seq_tile(seq_len):
    # Largest lane/sublane-friendly tile that divides S; full extent otherwise.
    for t in (128, 64, 32, 16, 8):
        if seq_len % t == 0:
            return t
    return seq_len


def decoder_embeddings(tokens, input_type, params):
    """Pallas forward of DecoderEmbeddings. Returns (embeddings, position_embeds)."""
    B, S = tokens.shape
    word = params["word_embeddings"]                              # (V, H)
    pos_name = {"pt": "pt_position_embeddings",
                "poly": "poly_position_embeddings",
                "rec": "rec_position_embeddings"}[input_type]
    pos = params[pos_name][:S]                                    # (S, H), position_ids = arange(S)
    V, H = word.shape
    gamma = params["ln_weight"].reshape(1, H)
    beta = params["ln_bias"].reshape(1, H)

    # Clamp ids so a bad token id cannot turn into an out-of-bounds HBM DMA
    # (PyTorch nn.Embedding would raise on such input instead).
    ids_flat = jnp.clip(tokens.astype(jnp.int32), 0, V - 1).reshape(B * S)

    tile_s = _pick_seq_tile(S)
    grid = (B, S // tile_s)

    grid_spec = pltpu.PrefetchScalarGridSpec(
        num_scalar_prefetch=1,
        grid=grid,
        in_specs=[
            pl.BlockSpec(memory_space=pl.ANY),                        # vocab table stays in HBM
            pl.BlockSpec((tile_s, H), lambda b, s, ids: (s, 0)),      # position rows for this tile
            pl.BlockSpec((1, H), lambda b, s, ids: (0, 0)),           # LN gamma (resident)
            pl.BlockSpec((1, H), lambda b, s, ids: (0, 0)),           # LN beta  (resident)
        ],
        out_specs=pl.BlockSpec((1, tile_s, H), lambda b, s, ids: (b, s, 0)),
        scratch_shapes=[
            pltpu.VMEM((tile_s, H), word.dtype),
            pltpu.SemaphoreType.DMA(()),
        ],
    )

    emb = pl.pallas_call(
        _decoder_embeddings_kernel,
        out_shape=jax.ShapeDtypeStruct((B, S, H), jnp.float32),
        grid_spec=grid_spec,
        compiler_params=pltpu.CompilerParams(
            dimension_semantics=("parallel", "parallel")),
    )(ids_flat, word, pos, gamma, beta)

    # The module's second output is just the position table broadcast over the
    # batch; produce it in the wrapper instead of burning kernel stores.
    pos_out = jnp.broadcast_to(pos[None].astype(jnp.float32), (B, S, H))
    return emb, pos_out


def init_params(key, vocab_size, hidden_dim, pad_token_id,
                max_position_embeddings):
    """Deterministic init matching the module's __init__ shapes."""
    k = jax.random.split(key, 5)
    word = jax.random.normal(k[0], (vocab_size, hidden_dim), jnp.float32)
    word = word.at[pad_token_id].set(0.0)  # nn.Embedding padding_idx row is zero
    params = {
        "word_embeddings": word,
        "pt_position_embeddings":
            jax.random.normal(k[1], (max_position_embeddings, hidden_dim), jnp.float32),
        "poly_position_embeddings":
            jax.random.normal(k[2], (max_position_embeddings, hidden_dim), jnp.float32),
        "rec_position_embeddings":
            jax.random.normal(k[3], (max_position_embeddings, hidden_dim), jnp.float32),
        "other_position_embeddings":  # present in __init__, unused in forward
            jax.random.normal(k[4], (max_position_embeddings, hidden_dim), jnp.float32),
        "ln_weight": jnp.ones((hidden_dim,), jnp.float32),   # LayerNorm default init
        "ln_bias": jnp.zeros((hidden_dim,), jnp.float32),
    }
    return params


def reference(tokens, input_type, params):
    """Pure-JAX reference of the PyTorch forward (eval mode)."""
    S = tokens.shape[1]
    word = params["word_embeddings"]
    pos_name = {"pt": "pt_position_embeddings",
                "poly": "poly_position_embeddings",
                "rec": "rec_position_embeddings"}[input_type]
    pos = params[pos_name][:S]                       # (S, H)
    we = word[tokens]                                # (B, S, H)
    pe = jnp.broadcast_to(pos[None], we.shape)       # (B, S, H)
    x = we + pe
    mean = jnp.mean(x, axis=-1, keepdims=True)
    var = jnp.mean((x - mean) ** 2, axis=-1, keepdims=True)
    normed = (x - mean) * jax.lax.rsqrt(var + 1e-5)
    out = normed * params["ln_weight"] + params["ln_bias"]
    return out, pe


if __name__ == "__main__":
    # Small, module-consistent shapes.
    B, S = 2, 8
    vocab_size, hidden_dim = 32, 32
    pad_token_id = 0
    max_position_embeddings = 16
    dropout = 0.1  # eval mode -> identity

    key = jax.random.PRNGKey(0)
    kp, kt = jax.random.split(key)
    params = init_params(kp, vocab_size, hidden_dim, pad_token_id,
                         max_position_embeddings)
    tokens = jax.random.randint(kt, (B, S), 0, vocab_size, dtype=jnp.int32)

    emb, pos_out = decoder_embeddings(tokens, "pt", params)
    emb = jax.block_until_ready(emb)
    pos_out = jax.block_until_ready(pos_out)

    ref_emb, ref_pos = reference(tokens, "pt", params)
    assert emb.shape == (B, S, hidden_dim) and pos_out.shape == (B, S, hidden_dim)
    assert jnp.allclose(emb, ref_emb, atol=1e-5, rtol=1e-5)
    assert jnp.allclose(pos_out, ref_pos, atol=1e-6, rtol=1e-6)

    print("KERNEL_OK")
</pallas_src>

<mosaic_0001>
module attributes {stable_mosaic.version = 11 : i64} {
  func.func @_decoder_embeddings_kernel(%arg0: i32, %arg1: i32, %arg2: memref<16xi32, #tpu.memory_space<smem>>, %arg3: memref<32x32xf32, #tpu.memory_space<any>>, %arg4: memref<8x32xf32, #tpu.memory_space<vmem>>, %arg5: memref<1x32xf32, #tpu.memory_space<vmem>>, %arg6: memref<1x32xf32, #tpu.memory_space<vmem>>, %arg7: memref<1x8x32xf32, #tpu.memory_space<vmem>>, %arg8: memref<8x32xf32, #tpu.memory_space<vmem>>, %arg9: memref<!tpu.dma_semaphore, #tpu.memory_space<semaphore_mem>>) attributes {dimension_semantics = [#tpu.dimension_semantics<parallel>, #tpu.dimension_semantics<parallel>], iteration_bounds = array<i64: 2, 1>, scalar_prefetch = 1 : i64, scratch_operands = 2 : i64, tpu.core_type = #tpu.core_type<tc>, window_params = [{}, {transform_indices = @transform_1, window_bounds = array<i64: 8, 32>}, {pipeline_mode = #tpu.pipeline_mode<synchronous>, transform_indices = @transform_2, window_bounds = array<i64: 1, 32>}, {pipeline_mode = #tpu.pipeline_mode<synchronous>, transform_indices = @transform_3, window_bounds = array<i64: 1, 32>}, {transform_indices = @transform_4, window_bounds = array<i64: 1, 8, 32>}]} {
    %c8_i32 = arith.constant 8 : i32
    %0 = arith.muli %arg0, %c8_i32 : i32
    %c8_i32_0 = arith.constant 8 : i32
    %1 = arith.muli %arg1, %c8_i32_0 : i32
    %2 = arith.addi %0, %1 : i32
    %c0_i32 = arith.constant 0 : i32
    %c8_i32_1 = arith.constant 8 : i32
    %3 = arith.addi %c0_i32, %c8_i32_1 : i32
    %c1_i32 = arith.constant 1 : i32
    scf.for %arg10 = %c0_i32 to %3 step %c1_i32  : i32 {
      %c1_i32_21 = arith.constant 1 : i32
      %35 = arith.muli %arg10, %c1_i32_21 : i32
      %c0_i32_22 = arith.constant 0 : i32
      %36 = arith.addi %c0_i32_22, %35 : i32
      %37 = arith.addi %2, %36 : i32
      %38 = arith.index_cast %37 : i32 to index
      %39 = memref.load %arg2[%38] : memref<16xi32, #tpu.memory_space<smem>>
      %c0_i32_23 = arith.constant 0 : i32
      %40 = tpu.memref_slice %arg3[%39, %c0_i32_23] : memref<32x32xf32, #tpu.memory_space<any>> -> memref<1x32xf32, #tpu.memory_space<any>>
      %c0_i32_24 = arith.constant 0 : i32
      %41 = tpu.memref_slice %arg8[%36, %c0_i32_24] : memref<8x32xf32, #tpu.memory_space<vmem>> -> memref<1x32xf32, #tpu.memory_space<vmem>>
      tpu.enqueue_dma source(%40 : memref<1x32xf32, #tpu.memory_space<any>>) target(%41 : memref<1x32xf32, #tpu.memory_space<vmem>>) target_semaphore(%arg9 : memref<!tpu.dma_semaphore, #tpu.memory_space<semaphore_mem>>)
    }
    %c8_i32_2 = arith.constant 8 : i32
    %c0_i32_3 = arith.constant 0 : i32
    %c8_i32_4 = arith.constant 8 : i32
    %4 = arith.addi %c0_i32_3, %c8_i32_4 : i32
    %c1_i32_5 = arith.constant 1 : i32
    scf.for %arg10 = %c0_i32_3 to %4 step %c1_i32_5  : i32 {
      %c1_i32_21 = arith.constant 1 : i32
      %35 = arith.muli %arg10, %c1_i32_21 : i32
      %c0_i32_22 = arith.constant 0 : i32
      %36 = arith.addi %c0_i32_22, %35 : i32
      %c0_i32_23 = arith.constant 0 : i32
      %c0_i32_24 = arith.constant 0 : i32
      %37 = tpu.memref_slice %arg3[%c0_i32_23, %c0_i32_24] : memref<32x32xf32, #tpu.memory_space<any>> -> memref<1x32xf32, #tpu.memory_space<any>>
      %c0_i32_25 = arith.constant 0 : i32
      %38 = tpu.memref_slice %arg8[%36, %c0_i32_25] : memref<8x32xf32, #tpu.memory_space<vmem>> -> memref<1x32xf32, #tpu.memory_space<vmem>>
      tpu.wait_dma2 semaphore(%arg9 : memref<!tpu.dma_semaphore, #tpu.memory_space<semaphore_mem>>) src(%37 : memref<1x32xf32, #tpu.memory_space<any>>) dst(%38 : memref<1x32xf32, #tpu.memory_space<vmem>>)
    }
    %c8_i32_6 = arith.constant 8 : i32
    %c0 = arith.constant 0 : index
    %c0_7 = arith.constant 0 : index
    %5 = vector.load %arg8[%c0, %c0_7] : memref<8x32xf32, #tpu.memory_space<vmem>>, vector<8x32xf32>
    %c0_8 = arith.constant 0 : index
    %c0_9 = arith.constant 0 : index
    %6 = vector.load %arg4[%c0_8, %c0_9] : memref<8x32xf32, #tpu.memory_space<vmem>>, vector<8x32xf32>
    %7 = arith.addf %5, %6 : vector<8x32xf32>
    %cst = arith.constant dense<0.000000e+00> : vector<8xf32>
    %8 = vector.multi_reduction <add>, %7, %cst [1] : vector<8x32xf32> to vector<8xf32>
    %9 = vector.shape_cast %8 : vector<8xf32> to vector<8x1xf32>
    %cst_10 = arith.constant 3.200000e+01 : f32
    %10 = vector.broadcast %cst_10 : f32 to vector<8x1xf32>
    %11 = arith.divf %9, %10 : vector<8x1xf32>
    %12 = vector.broadcast %11 : vector<8x1xf32> to vector<8x32xf32>
    %13 = arith.subf %7, %12 : vector<8x32xf32>
    %14 = arith.mulf %13, %13 : vector<8x32xf32>
    %cst_11 = arith.constant dense<0.000000e+00> : vector<8xf32>
    %15 = vector.multi_reduction <add>, %14, %cst_11 [1] : vector<8x32xf32> to vector<8xf32>
    %16 = vector.shape_cast %15 : vector<8xf32> to vector<8x1xf32>
    %cst_12 = arith.constant 3.200000e+01 : f32
    %17 = vector.broadcast %cst_12 : f32 to vector<8x1xf32>
    %18 = arith.divf %16, %17 : vector<8x1xf32>
    %19 = vector.broadcast %11 : vector<8x1xf32> to vector<8x32xf32>
    %20 = arith.subf %7, %19 : vector<8x32xf32>
    %cst_13 = arith.constant 9.99999974E-6 : f32
    %21 = vector.broadcast %cst_13 : f32 to vector<8x1xf32>
    %22 = arith.addf %18, %21 : vector<8x1xf32>
    %23 = math.rsqrt %22 : vector<8x1xf32>
    %24 = vector.broadcast %23 : vector<8x1xf32> to vector<8x32xf32>
    %25 = arith.mulf %20, %24 : vector<8x32xf32>
    %c0_14 = arith.constant 0 : index
    %c0_15 = arith.constant 0 : index
    %26 = vector.load %arg5[%c0_14, %c0_15] : memref<1x32xf32, #tpu.memory_space<vmem>>, vector<1x32xf32>
    %27 = vector.broadcast %26 : vector<1x32xf32> to vector<8x32xf32>
    %28 = arith.mulf %25, %27 : vector<8x32xf32>
    %c0_16 = arith.constant 0 : index
    %c0_17 = arith.constant 0 : index
    %29 = vector.load %arg6[%c0_16, %c0_17] : memref<1x32xf32, #tpu.memory_space<vmem>>, vector<1x32xf32>
    %30 = vector.broadcast %29 : vector<1x32xf32> to vector<8x32xf32>
    %31 = arith.addf %28, %30 : vector<8x32xf32>
    %c0_18 = arith.constant 0 : index
    %c0_19 = arith.constant 0 : index
    %c0_20 = arith.constant 0 : index
    %32 = vector.load %arg7[%c0_18, %c0_19, %c0_20] : memref<1x8x32xf32, #tpu.memory_space<vmem>>, vector<1x8x32xf32>
    %33 = vector.shape_cast %32 : vector<1x8x32xf32> to vector<8x32xf32>
    %34 = vector.shape_cast %31 : vector<8x32xf32> to vector<1x8x32xf32>
    tpu.vector_store %arg7[%c0_18, %c0_19, %c0_20], %34 {strides = array<i32>} : memref<1x8x32xf32, #tpu.memory_space<vmem>>, vector<1x8x32xf32>,
    return
  }
  func.func @transform_1(%arg0: i32, %arg1: i32, %arg2: memref<16xi32, #tpu.memory_space<smem>>) -> (i32, i32) {
    %c0_i32 = arith.constant 0 : i32
    %c0_i32_0 = arith.constant 0 : i32
    return %arg1, %c0_i32 : i32, i32
  }
  func.func @transform_2(%arg0: i32, %arg1: i32, %arg2: memref<16xi32, #tpu.memory_space<smem>>) -> (i32, i32) {
    %c0_i32 = arith.constant 0 : i32
    %c0_i32_0 = arith.constant 0 : i32
    %c0_i32_1 = arith.constant 0 : i32
    return %c0_i32, %c0_i32_0 : i32, i32
  }
  func.func @transform_3(%arg0: i32, %arg1: i32, %arg2: memref<16xi32, #tpu.memory_space<smem>>) -> (i32, i32) {
    %c0_i32 = arith.constant 0 : i32
    %c0_i32_0 = arith.constant 0 : i32
    %c0_i32_1 = arith.constant 0 : i32
    return %c0_i32, %c0_i32_0 : i32, i32
  }
  func.func @transform_4(%arg0: i32, %arg1: i32, %arg2: memref<16xi32, #tpu.memory_space<smem>>) -> (i32, i32, i32) {
    %c0_i32 = arith.constant 0 : i32
    %c0_i32_0 = arith.constant 0 : i32
    return %arg0, %arg1, %c0_i32 : i32, i32, i32
  }
}

</mosaic_0001>

<llo_original>
// kernel: tpu_custom_call.1
$region0: #{tpu_custom_call.1}
  #allocation0 [shape = 'u32[]', space=smem, size = 0x4, offset = 0x4, fixed_abs, tag = 'smem constant byte address 0x4 - core index']
  #allocation1 [shape = 'u32[144,128]{1,0:T(1,128)}', space=vmem, size = 0x12000, scoped, tag = 'internal scratch']
  #allocation2 [shape = 'f32[8,32]{1,0:T(8,128)}', space=vmem, size = 0x1000, scoped, tag = 'scratch operand']
  #allocation3 [shape = 's32[1]{0}', space=sflag, size = 0x4, scoped, tag = 'scratch operand']
  #allocation4 [shape = 's32[1]{0}', space=sflag, size = 0x4, scoped, tag = 'scoped memory for tpu_custom_call.1']
  #allocation5 [shape = 'u8[512]{0}', space=smem, size = 0x200, scoped, tag = 'prefetched SMEM operand 0']
  #allocation10 [shape = 's32[]', space=sflag, size = 0x4, offset = 0, fixed_abs, tag = 'sflag constant byte address 0x0 - dummy sync flag']
  #allocation11 [shape = 's32[]', space=sflag, size = 0x4, offset = 0, fixed_abs, tag = 'sflag constant byte address 0x0 - dummy sync flag']
  #allocation12 [shape = 'u32[]', space=smem, size = 0x4, offset = 0x44, fixed_abs, tag = 'smem constant byte address 0x44 - assertion arg 0']
  #allocation13 [shape = 'u32[]', space=smem, size = 0x4, offset = 0x48, fixed_abs, tag = 'smem constant byte address 0x48 - assertion arg 1']
  %s0 = inlined_call_operand.hbm [shape: s32[16], index: 0, kind: input, shape index: {}]
  %s1 = inlined_call_operand.hbm [shape: f32[32,32], index: 1, kind: input, shape index: {}]
  %s2 = inlined_call_operand.hbm [shape: f32[8,32], index: 2, kind: input, shape index: {}]
  %s3 = inlined_call_operand.vmem [shape: f32[1,32], index: 3, kind: input, shape index: {}]
  %s4 = inlined_call_operand.vmem [shape: f32[1,32], index: 4, kind: input, shape index: {}]
  %s5 = inlined_call_operand.hbm [shape: f32[2,8,32], index: 5, kind: output, shape index: {}]
  %s6 = sld [smem:[#allocation0]]
  $region67: #{tpu_custom_call.1} parent=0
    _
  %s8 = ssub.s32 1, %s6
  %s9 = scalar_select 0, %s8, %s6
  %11 = dma.hbm_to_smem %s0, 16, [#allocation5], [#allocation4]
  %12 = dma.done [#allocation4], 16
  %13 = sfence
  $region1: #{tpu_custom_call.1} parent=0
    #allocation6 [shape = 'u8[4096]{0}', space=vmem, size = 0x1000, scoped, tag = 'input window, operand 2, single buffered']
    #allocation7 [shape = 's32[2]{0}', space=sflag, size = 0x8, scoped, tag = 'scoped memory for tpu_custom_call.1']
    #allocation8 [shape = 's32[2]{0}', space=sflag, size = 0x8, scoped, tag = 'scoped memory for tpu_custom_call.1']
    #allocation9 [shape = 'u8[8192]{0}', space=vmem, size = 0x2000, scoped, tag = 'output window, operand 0']
    %14 = vsyncpa [#allocation7], 0
    %15 = vsyncpa [#allocation8], 0
    %s16 = scalar_lea.sflag [#allocation8], 1
    %17 = vsyncpa %s16, 0
    loop: start=0, step=1, limit=4
    $region2: #{tpu_custom_call.1} parent=1 // loop_pre_header
      _
    $region3: #{tpu_custom_call.1} parent=1 // loop_header
      %s19 = sphi 0, %s23
      %p20 = scmp.ge.s32.totalorder %s19, 4
      %s26 = sphi 0, %s38
      %s27 = sphi 0, %s34
      %s28 = sphi 0, %s26
      %s29 = sphi 0, %s27
      %s30 = sphi 0, %s28
      %s31 = sphi 0, %s29
      %s41 = sphi 0, %s43
      %s44 = sphi 0, %s41
      %s45 = sphi 0, %s44
      %s61 = sphi 0, %s45
      %s65 = sphi 0, %s65
      %s67 = sphi 0, %s65
      %s68 = sphi 0, %s67
      %s82 = sphi 0, %s68
      %s86 = sphi 0, %s86
      %s88 = sphi 0, %s86
      %s89 = sphi 0, %s88
      %s103 = sphi 0, %s89
      %s111 = sphi 0, %s113
      %s114 = sphi 0, %s111
      %s115 = sphi 0, %s114
      %s131 = sphi 0, %s115
    $region4: #{tpu_custom_call.1} parent=1 // loop_header_branch
      %22 = sbr.rel (%p20) target = $region8
    $region5: #{tpu_custom_call.1} parent=1 // loop_body
      %s24 = ssub.s32 %s19, 1
      %s25 = ssub.s32 %s19, 2
      %s32 = sadd.s32 1, %s27
      %p33 = scmp.ge.s32.totalorder %s32, 1
      %s34 = scalar_select %p33, 0, %s32
      %s35 = sadd.s32 1, %s26
      %s36 = scalar_select %p33, %s35, %s26
      %p37 = scmp.ge.s32.totalorder %s36, 2
      %s38 = scalar_select %p37, 0, %s36
      %s39 = ssub.s32 %s27, %s34
      %p40 = scmp.eq.s32.totalorder %s39, 0
      %s42 = sadd.s32 %s41, 1
      %s43 = scalar_select %p40, %s41, %s42
      %p46 = pneg %p40
      %p47 = scmp.eq.s32.totalorder %s19, 1
      %p48 = por %p46, %p47
      %p49 = scmp.ne.s32.totalorder %s41, %s44
      %p50 = scmp.eq.s32.totalorder %s19, 0
      %p51 = por %p49, %p50
      %p52 = scmp.ne.s32.totalorder %s41, %s44
      %p53 = scmp.eq.s32.totalorder %s24, 1
      %p54 = por %p52, %p53
      %p55 = scmp.ne.s32.totalorder %s44, %s45
      %p56 = scmp.eq.s32.totalorder %s24, 0
      %p57 = por %p55, %p56
      %p58 = scmp.ne.s32.totalorder %s44, %s45
      %p59 = scmp.eq.s32.totalorder %s25, 1
      %p60 = por %p58, %p59
      %p62 = scmp.ne.s32.totalorder %s45, %s61
      %p63 = scmp.eq.s32.totalorder %s25, 0
      %p64 = por %p62, %p63
      %s66 = sadd.s32 %s65, 1
      %p69 = scmp.eq.s32.totalorder %s19, 1
      %p70 = scmp.ne.s32.totalorder %s65, %s67
      %p71 = scmp.eq.s32.totalorder %s19, 0
      %p72 = por %p70, %p71
      %p73 = scmp.ne.s32.totalorder %s65, %s67
      %p74 = scmp.eq.s32.totalorder %s24, 1
      %p75 = por %p73, %p74
      %p76 = scmp.ne.s32.totalorder %s67, %s68
      %p77 = scmp.eq.s32.totalorder %s24, 0
      %p78 = por %p76, %p77
      %p79 = scmp.ne.s32.totalorder %s67, %s68
      %p80 = scmp.eq.s32.totalorder %s25, 1
      %p81 = por %p79, %p80
      %p83 = scmp.ne.s32.totalorder %s68, %s82
      %p84 = scmp.eq.s32.totalorder %s25, 0
      %p85 = por %p83, %p84
      %s87 = sadd.s32 %s86, 1
      %p90 = scmp.eq.s32.totalorder %s19, 1
      %p91 = scmp.ne.s32.totalorder %s86, %s88
      %p92 = scmp.eq.s32.totalorder %s19, 0
      %p93 = por %p91, %p92
      %p94 = scmp.ne.s32.totalorder %s86, %s88
      %p95 = scmp.eq.s32.totalorder %s24, 1
      %p96 = por %p94, %p95
      %p97 = scmp.ne.s32.totalorder %s88, %s89
      %p98 = scmp.eq.s32.totalorder %s24, 0
      %p99 = por %p97, %p98
      %p100 = scmp.ne.s32.totalorder %s88, %s89
      %p101 = scmp.eq.s32.totalorder %s25, 1
      %p102 = por %p100, %p101
      %p104 = scmp.ne.s32.totalorder %s89, %s103
      %p105 = scmp.eq.s32.totalorder %s25, 0
      %p106 = por %p104, %p105
      %s107 = ssub.s32 %s26, %s38
      %s108 = ssub.s32 %s27, %s34
      %s109 = sor.u32 %s107, %s108
      %p110 = scmp.eq.s32.totalorder %s109, 0
      %s112 = sadd.s32 %s111, 1
      %s113 = scalar_select %p110, %s111, %s112
      %p116 = pneg %p110
      %p117 = scmp.eq.s32.totalorder %s19, 1
      %p118 = por %p116, %p117
      %p119 = scmp.ne.s32.totalorder %s111, %s114
      %p120 = scmp.eq.s32.totalorder %s19, 0
      %p121 = por %p119, %p120
      %p122 = scmp.ne.s32.totalorder %s111, %s114
      %p123 = scmp.eq.s32.totalorder %s24, 1
      %p124 = por %p122, %p123
      %p125 = scmp.ne.s32.totalorder %s114, %s115
      %p126 = scmp.eq.s32.totalorder %s24, 0
      %p127 = por %p125, %p126
      %p128 = scmp.ne.s32.totalorder %s114, %s115
      %p129 = scmp.eq.s32.totalorder %s25, 1
      %p130 = por %p128, %p129
      %p132 = scmp.ne.s32.totalorder %s115, %s131
      %p133 = scmp.eq.s32.totalorder %s25, 0
      %p134 = por %p132, %p133
      %p135 = scmp.le.s32.totalorder 1, %s19
      %p136 = scmp.lt.s32.totalorder %s19, 3
      %p137 = pnand %p135, %p136
      %p138 = pneg %p137
      // Predicated region
      $region9: #{tpu_custom_call.1} parent=5 // pred_check
        _
      $region10: #{tpu_custom_call.1} parent=5 // pred_check_branch
        %140 = sbr.rel (%p137) target = $region12
      $region11: #{tpu_custom_call.1} parent=5 // pred_region
        %s141 = ssub.s32 %s19, 1
        // Predicated region
        $region13: #{tpu_custom_call.1} parent=11 // pred_check
          %p142 = pneg %p57
        $region14: #{tpu_custom_call.1} parent=11 // pred_check_branch
          %144 = sbr.rel (%p142) target = $region16
        $region15: #{tpu_custom_call.1} parent=11 // pred_region
          %s146 = ssub.s32 128, 128
          %147 = vsyncadd [#allocation7], %s146
          %s148 = smul.addr %s29, 128
          %s149 = scalar_lea.hbm %s2, %s148
          %s151 = sshll.u32 [#allocation6], 4
          %s152 = int_to_ptr.vmem [resolvable:$true] %s151
          %154 = dma.hbm_to_vmem [thread:$0]  %s149, 128, %s152, [#allocation7]
        $region16: #{tpu_custom_call.1} parent=11 // pred_fallthru
          _
        // Predicated region
        $region17: #{tpu_custom_call.1} parent=11 // pred_check
          %p155 = pneg %p78
        $region18: #{tpu_custom_call.1} parent=11 // pred_check_branch
          %157 = sbr.rel (%p155) target = $region20
        $region19: #{tpu_custom_call.1} parent=11 // pred_region
          _
        $region20: #{tpu_custom_call.1} parent=11 // pred_fallthru
          _
        // Predicated region
        $region21: #{tpu_custom_call.1} parent=11 // pred_check
          %p158 = pneg %p99
        $region22: #{tpu_custom_call.1} parent=11 // pred_check_branch
          %160 = sbr.rel (%p158) target = $region24
        $region23: #{tpu_custom_call.1} parent=11 // pred_region
          _
        $region24: #{tpu_custom_call.1} parent=11 // pred_fallthru
          _
      $region12: #{tpu_custom_call.1} parent=5 // pred_fallthru
        _
      %p161 = scmp.lt.s32.totalorder %s19, 2
      // Predicated region
      $region25: #{tpu_custom_call.1} parent=5 // pred_check
        %p162 = pneg %p161
      $region26: #{tpu_custom_call.1} parent=5 // pred_check_branch
        %164 = sbr.rel (%p162) target = $region28
      $region27: #{tpu_custom_call.1} parent=5 // pred_region
        _
      $region28: #{tpu_custom_call.1} parent=5 // pred_fallthru
        _
      %p165 = scmp.le.s32.totalorder 1, %s19
      %p166 = scmp.lt.s32.totalorder %s19, 3
      %p167 = pnand %p165, %p166
      %p168 = pneg %p167
      // Predicated region
      $region29: #{tpu_custom_call.1} parent=5 // pred_check
        _
      $region30: #{tpu_custom_call.1} parent=5 // pred_check_branch
        %170 = sbr.rel (%p167) target = $region32
      $region31: #{tpu_custom_call.1} parent=5 // pred_region
        %s171 = ssub.s32 %s19, 1
        // Predicated region
        $region33: #{tpu_custom_call.1} parent=31 // pred_check
          %p172 = pneg %p57
        $region34: #{tpu_custom_call.1} parent=31 // pred_check_branch
          %174 = sbr.rel (%p172) target = $region36
        $region35: #{tpu_custom_call.1} parent=31 // pred_region
          %175 = dma.done [#allocation7], 128
        $region36: #{tpu_custom_call.1} parent=31 // pred_fallthru
          _
        %p176 = pneg %p57
        %p177 = pneg %p54
        %p178 = pneg %p78
        %p179 = pneg %p75
        %p180 = pneg %p99
        %p181 = pneg %p96
        %p182 = pneg %p127
        %p183 = pneg %p124
        %s184 = sand.u32 %s114, 1
        %s185 = scalar_lea.sflag [#allocation8], %s184
        %s186 = sand.u32 %s114, 1
        %s187 = smul.addr %s186, 8
        %s188 = scalar_lea.vmem [#allocation9], %s187
        %s189 = smul.u32 %s28, 8
        %s190 = smul.u32 %s29, 8
        %s191 = sadd.s32 %s189, %s190
        loop: start=0, step=1, limit=8
        $region37: #{tpu_custom_call.1} parent=31 // loop_pre_header
          _
        $region38: #{tpu_custom_call.1} parent=31 // loop_header
          %s193 = sphi 0, %s197
          %p194 = scmp.ge.s32.totalorder %s193, 8
        $region39: #{tpu_custom_call.1} parent=31 // loop_header_branch
          %196 = sbr.rel (%p194) target = $region43
        $region40: #{tpu_custom_call.1} parent=31 // loop_body
          %s198 = sadd.s32 %s191, %s193
          %s199 = sld [smem:[#allocation5 + %s198]]
          %s200 = smul.addr %s199, 16
          %s201 = scalar_lea.hbm %s1, %s200
          %s202 = scalar_lea.vmem [#allocation2], %s193
          // Predicated region
          $region44: #{tpu_custom_call.1} parent=40 // pred_check
            _
          $region45: #{tpu_custom_call.1} parent=40 // pred_check_branch
            %204 = sbr.rel target = $region47
          $region46: #{tpu_custom_call.1} parent=40 // pred_region
            %205 = sst [smem:[#allocation12]] [#allocation11]
            %206 = sst [smem:[#allocation13]] [#allocation10]
          $region47: #{tpu_custom_call.1} parent=40 // pred_fallthru
            _
          %208 = shalt.err (0)
          %s210 = sshll.u32 %s202, 4
          %s211 = int_to_ptr.vmem [resolvable:$true] %s210
          %213 = dma.hbm_to_vmem [thread:$0]  %s201, 16, %s211, [#allocation3]
        $region41: #{tpu_custom_call.1} parent=31 // loop_footer
          %s197 = sadd.s32 1, %s193
        $region42: #{tpu_custom_call.1} parent=31 // loop_footer_branch
          %192 = sbr.rel target = $region38
        $region43: #{tpu_custom_call.1} parent=31 // loop_exit
          _
        loop: start=0, step=1, limit=8
        $region48: #{tpu_custom_call.1} parent=31 // loop_pre_header
          _
        $region49: #{tpu_custom_call.1} parent=31 // loop_header
          %s215 = sphi 0, %s219
          %p216 = scmp.ge.s32.totalorder %s215, 8
        $region50: #{tpu_custom_call.1} parent=31 // loop_header_branch
          %218 = sbr.rel (%p216) target = $region54
        $region51: #{tpu_custom_call.1} parent=31 // loop_body
          %s220 = smul.u32 1, 1
          %s221 = sshll.u32 %s220, 4
          %222 = dma.done [#allocation3], %s221
        $region52: #{tpu_custom_call.1} parent=31 // loop_footer
          %s219 = sadd.s32 1, %s215
        $region53: #{tpu_custom_call.1} parent=31 // loop_footer_branch
          %214 = sbr.rel target = $region49
        $region54: #{tpu_custom_call.1} parent=31 // loop_exit
          _
        %v223 = vld [vmem:[#allocation2] sm:$0xff]
        %v224 = vld [vmem:[#allocation6] sm:$0xff]
        %v225 = vadd.f32 %v223, %v224
        %vm226 = vcmask 261120
        %v227 = vsel %vm226, %v225, 0.0
        %228 = vadd.xlane.f32.xlu0 %v227
        %v229 = vpop.xlane.xlu0 %228
        %v230 = vrcp.pop 32.0
        %v231 = vmul.f32 %v229, %v230
        %v232 = vsub.f32 %v225, %v231
        %v233 = vmul.f32 %v232, %v232
        %v234 = vsel %vm226, %v233, 0.0
        %235 = vadd.xlane.f32.xlu0 %v234
        %v236 = vpop.xlane.xlu0 %235
        %v237 = vmul.f32 %v236, %v230
        %v238 = vadd.f32 %v237, 1e-05
        %v239 = vrsqrt.pop %v238
        %v240 = vmul.f32 %v232, %v239
        %v241 = vld [vmem:[%s3] sm:$0x1]
        %v243 = vlaneseq
        %v244 = vshrl.u32 %v243, 7
        %v245 = vsub.s32 0, %v244
        %v246 = vrot.slane %v241, %v245
        %v248 = vmul.f32 %v240, %v246
        %v249 = vld [vmem:[%s4] sm:$0x1]
        %v251 = vlaneseq
        %v252 = vshrl.u32 %v251, 7
        %v253 = vsub.s32 0, %v252
        %v254 = vrot.slane %v249, %v253
        %v256 = vadd.f32 %v248, %v254
        %257 = vst.msk [vmem:[%s188] sm:$0xff] %vm226, %v256
        %s258 = sand.u32 %s114, 1
        %s259 = scalar_lea.sflag [#allocation8], %s258
        %s260 = sand.u32 %s114, 1
        %s261 = smul.addr %s260, 8
        %s262 = scalar_lea.vmem [#allocation9], %s261
        // Predicated region
        $region55: #{tpu_custom_call.1} parent=31 // pred_check
          %p263 = pneg %p124
        $region56: #{tpu_custom_call.1} parent=31 // pred_check_branch
          %265 = sbr.rel (%p263) target = $region58
        $region57: #{tpu_custom_call.1} parent=31 // pred_region
          %s267 = ssub.s32 128, 128
          %268 = vsyncadd %s259, %s267
          %s269 = sadd.s32 %s29, %s28
          %s270 = smul.addr %s269, 128
          %s271 = scalar_lea.hbm %s5, %s270
          %s273 = sshll.u32 %s262, 4
          %s274 = int_to_ptr.vmem [resolvable:$true] %s273
          %276 = dma.vmem_to_hbm [thread:$0]  %s274, 128, %s271, %s259
        $region58: #{tpu_custom_call.1} parent=31 // pred_fallthru
          _
      $region32: #{tpu_custom_call.1} parent=5 // pred_fallthru
        _
      %p277 = scmp.le.s32.totalorder 2, %s19
      // Predicated region
      $region59: #{tpu_custom_call.1} parent=5 // pred_check
        %p278 = pneg %p277
      $region60: #{tpu_custom_call.1} parent=5 // pred_check_branch
        %280 = sbr.rel (%p278) target = $region62
      $region61: #{tpu_custom_call.1} parent=5 // pred_region
        %s281 = ssub.s32 %s19, 2
        // Predicated region
        $region63: #{tpu_custom_call.1} parent=61 // pred_check
          %p282 = pneg %p130
        $region64: #{tpu_custom_call.1} parent=61 // pred_check_branch
          %284 = sbr.rel (%p282) target = $region66
        $region65: #{tpu_custom_call.1} parent=61 // pred_region
          %s285 = sand.u32 %s115, 1
          %s286 = scalar_lea.sflag [#allocation8], %s285
          %s287 = sand.u32 %s115, 1
          %s288 = smul.addr %s287, 8
          %s289 = scalar_lea.vmem [#allocation9], %s288
          %290 = dma.done %s286, 128
        $region66: #{tpu_custom_call.1} parent=61 // pred_fallthru
          _
      $region62: #{tpu_custom_call.1} parent=5 // pred_fallthru
        _
    $region6: #{tpu_custom_call.1} parent=1 // loop_footer
      %s23 = sadd.s32 1, %s19
    $region7: #{tpu_custom_call.1} parent=1 // loop_footer_branch
      %18 = sbr.rel target = $region3
    $region8: #{tpu_custom_call.1} parent=1 // loop_exit
      _
    %291 = vsyncpa [#allocation7], 1
    %s292 = scalar_lea.sflag [#allocation7], 1
    %293 = vsyncpa %s292, 1
    %294 = vsyncpa [#allocation8], 1
    %s295 = scalar_lea.sflag [#allocation8], 1
    %296 = vsyncpa %s295, 1
  %297 = vsyncmov [#allocation3]
  %s298 = vpop.sfrf %297
  %p299 = scmp.eq.s32.totalorder %s298, 0
  %p300 = pneg %p299
  %302 = shalt.err (%p300)

</llo_original>
